<compile_context>
chip_gen: v7x
topology: tpu7x:2x2x1
jax: 0.10.0
libtpu: 0.0.40
codegen_flags: <defaults>
</compile_context>

<pallas_src>
import jax
import jax.numpy as jnp
from jax import lax
from jax.experimental import pallas as pl
from jax.experimental.pallas import tpu as pltpu

BN_EPS = 1e-5
_LANE = 128


def _round_up(a, b):
    return (a + b - 1) // b * b


def _tpu_params():
    """Returns (VMEM bytes per TensorCore, TensorCores to shard over, MXU align)."""
    kind = ""
    try:
        kind = jax.devices()[0].device_kind.lower()
    except Exception:
        pass
    is_v7 = ("v7" in kind) or ("tpu7" in kind)
    is_v6 = ("v6" in kind) or ("tpu6" in kind)
    vmem_cap = (64 << 20) if is_v7 else (128 << 20)
    try:
        info = pltpu.get_tpu_info()
        vmem_cap = int(getattr(info, "vmem_capacity_bytes", vmem_cap))
    except Exception:
        pass
    # v7x has 2 TensorCores per chip (v4 / v5p megacore likewise); shard the
    # streaming reduction across them via a leading "parallel" grid axis.
    num_tc = 2 if (is_v7 or "v5p" in kind or "v4" in kind) else 1
    mxu_align = 256 if (is_v6 or is_v7) else 128
    return vmem_cap, num_tc, mxu_align


def _choose_spatial_tile(s, n_batch, cin, bytes_per, vmem_cap):
    """Largest lane-multiple spatial tile whose working set fits the VMEM budget."""
    # Generation-aware budget: ~96 MiB on 128-MiB chips (v5e/v6e), ~40 MiB on
    # 64-MiB chips (v7x).
    budget = (40 << 20) if vmem_cap <= (64 << 20) else (96 << 20)
    # Resident (non-streamed) VMEM: gram output block (double-buffered) plus a
    # (Cin, Cin) f32 dot-result temporary, the sum block, and slack.
    resident = 3 * 4 * cin * cin + 2 * 4 * n_batch * cin + (1 << 20)
    tile_budget = budget - resident
    copies = 2 + (1 if bytes_per < 4 else 0)  # double buffer (+ f32-cast temp)
    per_lane = max(1, n_batch * cin * bytes_per)
    if tile_budget < copies * per_lane * _LANE:
        # Even a 128-lane tile exceeds the budget; fall back to the floor and
        # let vmem_limit_bytes grow to cover the actual block.
        # TODO(synk): split N into an extra grid axis for huge N*Cin problems.
        return _LANE
    ts = tile_budget // (copies * per_lane)
    ts = max(_LANE, (ts // _LANE) * _LANE)
    return int(min(ts, _round_up(s, _LANE)))


def _make_kernel(n_batch):
    def kernel(x_ref, gram_ref, sum_ref):
        # x_ref:    (N, Cin, ts)   spatial tile (zero-padded past S / Cin)
        # gram_ref: (1, Cin, Cin)  f32 per-core partial Gram (resident over k)
        # sum_ref:  (1, N, Cin)    f32 per-core partial spatial sums
        k = pl.program_id(1)

        @pl.when(k == 0)
        def _init():
            gram_ref[...] = jnp.zeros_like(gram_ref)
            sum_ref[...] = jnp.zeros_like(sum_ref)

        x = x_ref[...]                                       # native dtype (bf16 ok)

        # Per-sample spatial sums; f32 accumulation (v5e has no bf16 VPU, so the
        # cast is mandatory there).  The per-step lane reduce sits well below
        # the HBM / MXU roofline, so it is not hoisted to a lane-wide partial.
        sum_ref[0] = sum_ref[0] + jnp.sum(x.astype(jnp.float32), axis=2)

        # Gram update on the MXU: contraction over the spatial (lane) axis of
        # both operands -> transposed-RHS lowering, no per-step vxpose.  Keep
        # the accumulation as a value chain so the Cin^2 VMEM block is read and
        # written once per grid step (not once per sample).
        g = gram_ref[0]
        for n in range(n_batch):                             # small, static N
            xn = x[n]                                        # (Cin, ts)
            g = g + lax.dot_general(
                xn, xn,
                dimension_numbers=(((1,), (1,)), ((), ())),
                preferred_element_type=jnp.float32)
        gram_ref[0] = g

    return kernel


def global_pool_block(x_nchw, conv_w, gamma, beta, output_stride, crop_size, *,
                      spatial_tile=None, input_compute_dtype=None, eps=BN_EPS):
    """Forward of Global_pool_block.

    x_nchw: (N, Cin, H, W); conv_w: (Cout, Cin, 1, 1); gamma/beta: (Cout,).
    Returns (N, Cout, Ho, Wo) with Ho = crop_size[0]//output_stride, etc.
    BN uses training-mode batch statistics.  Pass
    input_compute_dtype=jnp.bfloat16 to halve HBM traffic for f32 inputs.
    """
    n_batch, cin, h, w = x_nchw.shape
    cout = conv_w.shape[0]
    s_true = h * w
    out_dtype = x_nchw.dtype

    vmem_cap, num_tc, mxu_align = _tpu_params()

    x = x_nchw
    if input_compute_dtype is not None and x.dtype != jnp.dtype(input_compute_dtype):
        x = x.astype(input_compute_dtype)
    bytes_per = jnp.dtype(x.dtype).itemsize

    # Channel padding to the MXU tile width, only in the MXU-bound regime
    # (Cin >= 256) where the Gram matmul -- not the streaming read -- dominates
    # (the pad costs one extra HBM pass over x).  Zero channels are exact
    # no-ops for G and Sx and are sliced off before applying W.
    cin_k = _round_up(cin, mxu_align) if (cin >= 256 and cin % mxu_align) else cin

    # Spatial tile: lane multiple, sized so the double-buffered streamed tile
    # plus the resident Cin^2 accumulator fits the generation-aware VMEM budget.
    if spatial_tile is None:
        ts = _choose_spatial_tile(s_true, n_batch, cin_k, bytes_per, vmem_cap)
    else:
        ts = int(min(_round_up(s_true, _LANE), _round_up(int(spatial_tile), _LANE)))

    n_tiles = pl.cdiv(s_true, ts)
    p = max(1, min(num_tc, n_tiles))          # per-TensorCore partials
    n_tiles = _round_up(n_tiles, p)
    k_per_core = n_tiles // p
    s_pad = n_tiles * ts

    # NCHW -> (N, Cin, S): contiguous reshape (no transpose); zero-pad channel /
    # spatial axes as needed -- zeros do not change G or Sx and the divisors
    # below use the true S.
    x_ncs = x.reshape(n_batch, cin, s_true)
    if cin_k != cin or s_pad != s_true:
        x_ncs = jnp.pad(x_ncs, ((0, 0), (0, cin_k - cin), (0, s_pad - s_true)))

    # VMEM accounting tied to the actual block sizes: streamed tile x copies
    # (double buffer + f32-cast temp), gram/sum blocks, dot temporaries.
    copies = 2 + (1 if bytes_per < 4 else 0)
    tile_bytes = n_batch * cin_k * ts * bytes_per
    vmem_est = (copies * tile_bytes
                + 3 * 4 * cin_k * cin_k            # gram block (2 bufs) + dot temp
                + 2 * 4 * n_batch * cin_k          # sum block (2 bufs)
                + (1 << 20))
    vmem_ceiling = (96 << 20) if vmem_cap > (64 << 20) else (48 << 20)
    vmem_limit = int(min(max(vmem_est, 16 << 20), vmem_ceiling))

    kernel = _make_kernel(n_batch)

    gram_parts, sum_parts = pl.pallas_call(
        kernel,
        out_shape=(jax.ShapeDtypeStruct((p, cin_k, cin_k), jnp.float32),
                   jax.ShapeDtypeStruct((p, n_batch, cin_k), jnp.float32)),
        grid_spec=pltpu.PrefetchScalarGridSpec(
            num_scalar_prefetch=0,
            grid=(p, k_per_core),
            in_specs=[
                pl.BlockSpec((n_batch, cin_k, ts),
                             lambda c, k: (0, 0, c * k_per_core + k)),
            ],
            out_specs=[
                pl.BlockSpec((1, cin_k, cin_k), lambda c, k: (c, 0, 0)),
                pl.BlockSpec((1, n_batch, cin_k), lambda c, k: (c, 0, 0)),
            ],
        ),
        compiler_params=pltpu.CompilerParams(
            dimension_semantics=("parallel", "arbitrary"),
            vmem_limit_bytes=vmem_limit,
        ),
    )(x_ncs)

    # Tiny epilogue in plain JAX: combine per-core partials, fold in the 1x1
    # conv weight, apply training-mode BN, global pool.
    gram = jnp.sum(gram_parts, axis=0)[:cin, :cin]           # (Cin, Cin)
    sx = jnp.sum(sum_parts, axis=0)[:, :cin]                 # (N, Cin)
    wt = conv_w.reshape(cout, cin).T.astype(jnp.float32)     # (Cin, Cout)

    pooled = jnp.dot(sx, wt, preferred_element_type=jnp.float32) / float(s_true)
    mean_y = jnp.mean(pooled, axis=0, keepdims=True)                      # (1, Cout)
    gw = jnp.dot(gram, wt, preferred_element_type=jnp.float32)            # (Cin, Cout)
    ey2 = jnp.sum(wt * gw, axis=0, keepdims=True) / float(n_batch * s_true)
    var = jnp.maximum(ey2 - mean_y * mean_y, 0.0)        # clamp uncentered variance
    inv_std = lax.rsqrt(var + eps)

    out_nc = ((pooled - mean_y) * inv_std * gamma.reshape(1, cout).astype(jnp.float32)
              + beta.reshape(1, cout).astype(jnp.float32)).astype(out_dtype)

    # "unpool": AdaptiveAvgPool2d from a 1x1 map to (Ho, Wo) is a broadcast.
    ho = int(crop_size[0] // output_stride)
    wo = int(crop_size[1] // output_stride)
    return jnp.broadcast_to(out_nc[:, :, None, None], (n_batch, cout, ho, wo))


def _reference(x_nchw, conv_w, gamma, beta, output_stride, crop_size):
    n, cin, h, w = x_nchw.shape
    cout = conv_w.shape[0]
    y = jnp.einsum("nchw,oc->nohw", x_nchw.astype(jnp.float32),
                   conv_w.reshape(cout, cin).astype(jnp.float32))
    mean = y.mean(axis=(0, 2, 3), keepdims=True)
    var = ((y - mean) ** 2).mean(axis=(0, 2, 3), keepdims=True)
    y = (y - mean) / jnp.sqrt(var + BN_EPS)
    y = y * gamma[None, :, None, None] + beta[None, :, None, None]
    gp = y.mean(axis=(2, 3), keepdims=True)
    ho = int(crop_size[0] // output_stride)
    wo = int(crop_size[1] // output_stride)
    return jnp.broadcast_to(gp, (n, cout, ho, wo))


if __name__ == "__main__":
    # small, deterministic problem
    n, cin, h, w = 2, 4, 16, 16
    cout = 8
    output_stride = 8
    crop_size = (32, 32)  # -> output spatial (4, 4)

    key = jax.random.PRNGKey(0)
    kx, kw, kg, kb = jax.random.split(key, 4)
    x = jax.random.normal(kx, (n, cin, h, w), dtype=jnp.float32)
    conv_w = jax.random.normal(kw, (cout, cin, 1, 1), dtype=jnp.float32) * 0.1
    gamma = 1.0 + 0.1 * jax.random.normal(kg, (cout,), dtype=jnp.float32)
    beta = 0.1 * jax.random.normal(kb, (cout,), dtype=jnp.float32)

    ref = _reference(x, conv_w, gamma, beta, output_stride, crop_size)
    ho, wo = crop_size[0] // output_stride, crop_size[1] // output_stride

    # f32 path; spatial_tile=128 -> >=2 grid steps, exercising the
    # init/accumulate path (and the 2-core split on multi-TC chips).
    out = global_pool_block(x, conv_w, gamma, beta, output_stride, crop_size,
                            spatial_tile=128)
    out = jax.block_until_ready(out)
    assert out.shape == (n, cout, ho, wo), out.shape
    assert jnp.allclose(out, ref, atol=1e-4, rtol=1e-4), (
        "f32 mismatch vs reference, max abs err = "
        + str(float(jnp.max(jnp.abs(out - ref)))))

    # bf16 streaming path (halves HBM traffic); looser tolerance vs f32 ref.
    out_bf16 = global_pool_block(x, conv_w, gamma, beta, output_stride,
                                 crop_size, spatial_tile=128,
                                 input_compute_dtype=jnp.bfloat16)
    out_bf16 = jax.block_until_ready(out_bf16)
    assert out_bf16.shape == (n, cout, ho, wo), out_bf16.shape
    assert jnp.allclose(out_bf16, ref, atol=2e-2, rtol=2e-2), (
        "bf16 mismatch vs reference, max abs err = "
        + str(float(jnp.max(jnp.abs(out_bf16 - ref)))))

    print("KERNEL_OK")
</pallas_src>

<mosaic_0001>
module attributes {stable_mosaic.version = 11 : i64} {
  func.func @kernel(%arg0: i32, %arg1: i32, %arg2: memref<2x4x128xf32, #tpu.memory_space<vmem>>, %arg3: memref<1x4x4xf32, #tpu.memory_space<vmem>>, %arg4: memref<1x2x4xf32, #tpu.memory_space<vmem>>) attributes {dimension_semantics = [#tpu.dimension_semantics<parallel>, #tpu.dimension_semantics<arbitrary>], iteration_bounds = array<i64: 1, 2>, scalar_prefetch = 0 : i64, scratch_operands = 0 : i64, tpu.core_type = #tpu.core_type<tc>, window_params = [{transform_indices = @transform_0, window_bounds = array<i64: 2, 4, 128>}, {transform_indices = @transform_1, window_bounds = array<i64: 1, 4, 4>}, {transform_indices = @transform_2, window_bounds = array<i64: 1, 2, 4>}]} {
    %c0_i32 = arith.constant 0 : i32
    %0 = arith.cmpi eq, %arg1, %c0_i32 : i32
    %1 = arith.extui %0 : i1 to i32
    %c0_i32_0 = arith.constant 0 : i32
    %2 = arith.cmpi ne, %1, %c0_i32_0 : i32
    scf.if %2 {
      %cst_17 = arith.constant 0.000000e+00 : f32
      %24 = vector.broadcast %cst_17 : f32 to vector<1x4x4xf32>
      %c0_18 = arith.constant 0 : index
      %c0_19 = arith.constant 0 : index
      %c0_20 = arith.constant 0 : index
      %25 = vector.load %arg3[%c0_18, %c0_19, %c0_20] : memref<1x4x4xf32, #tpu.memory_space<vmem>>, vector<1x4x4xf32>
      tpu.vector_store %arg3[%c0_18, %c0_19, %c0_20], %24 {strides = array<i32>} : memref<1x4x4xf32, #tpu.memory_space<vmem>>, vector<1x4x4xf32>,
      %cst_21 = arith.constant 0.000000e+00 : f32
      %26 = vector.broadcast %cst_21 : f32 to vector<1x2x4xf32>
      %c0_22 = arith.constant 0 : index
      %c0_23 = arith.constant 0 : index
      %c0_24 = arith.constant 0 : index
      %27 = vector.load %arg4[%c0_22, %c0_23, %c0_24] : memref<1x2x4xf32, #tpu.memory_space<vmem>>, vector<1x2x4xf32>
      tpu.vector_store %arg4[%c0_22, %c0_23, %c0_24], %26 {strides = array<i32>} : memref<1x2x4xf32, #tpu.memory_space<vmem>>, vector<1x2x4xf32>,
    } else {
    }
    %c0 = arith.constant 0 : index
    %c0_1 = arith.constant 0 : index
    %c0_2 = arith.constant 0 : index
    %3 = vector.load %arg2[%c0, %c0_1, %c0_2] : memref<2x4x128xf32, #tpu.memory_space<vmem>>, vector<2x4x128xf32>
    %c0_3 = arith.constant 0 : index
    %c0_4 = arith.constant 0 : index
    %c0_5 = arith.constant 0 : index
    %4 = vector.load %arg4[%c0_3, %c0_4, %c0_5] : memref<1x2x4xf32, #tpu.memory_space<vmem>>, vector<1x2x4xf32>
    %5 = vector.shape_cast %4 : vector<1x2x4xf32> to vector<2x4xf32>
    %cst = arith.constant dense<0.000000e+00> : vector<2x4xf32>
    %6 = vector.multi_reduction <add>, %3, %cst [2] : vector<2x4x128xf32> to vector<2x4xf32>
    %7 = arith.addf %5, %6 : vector<2x4xf32>
    %c0_6 = arith.constant 0 : index
    %c0_7 = arith.constant 0 : index
    %c0_8 = arith.constant 0 : index
    %8 = vector.load %arg4[%c0_6, %c0_7, %c0_8] : memref<1x2x4xf32, #tpu.memory_space<vmem>>, vector<1x2x4xf32>
    %9 = vector.shape_cast %8 : vector<1x2x4xf32> to vector<2x4xf32>
    %10 = vector.shape_cast %7 : vector<2x4xf32> to vector<1x2x4xf32>
    tpu.vector_store %arg4[%c0_6, %c0_7, %c0_8], %10 {strides = array<i32>} : memref<1x2x4xf32, #tpu.memory_space<vmem>>, vector<1x2x4xf32>,
    %c0_9 = arith.constant 0 : index
    %c0_10 = arith.constant 0 : index
    %c0_11 = arith.constant 0 : index
    %11 = vector.load %arg3[%c0_9, %c0_10, %c0_11] : memref<1x4x4xf32, #tpu.memory_space<vmem>>, vector<1x4x4xf32>
    %12 = vector.shape_cast %11 : vector<1x4x4xf32> to vector<4x4xf32>
    %13 = vector.extract_strided_slice %3 {offsets = [0, 0, 0], sizes = [1, 4, 128], strides = [1, 1, 1]} : vector<2x4x128xf32> to vector<1x4x128xf32>
    %14 = vector.shape_cast %13 : vector<1x4x128xf32> to vector<4x128xf32>
    %cst_12 = arith.constant dense<0.000000e+00> : vector<4x4xf32>
    %15 = tpu.matmul %14, %14, %cst_12 {dimension_numbers = #tpu.dot_dimension_numbers<[1], [1], [0], [0], [0, 0, 1, 0], [], []>} : vector<4x128xf32>, vector<4x128xf32>, vector<4x4xf32> -> vector<4x4xf32>
    %16 = arith.addf %12, %15 : vector<4x4xf32>
    %17 = vector.extract_strided_slice %3 {offsets = [1, 0, 0], sizes = [1, 4, 128], strides = [1, 1, 1]} : vector<2x4x128xf32> to vector<1x4x128xf32>
    %18 = vector.shape_cast %17 : vector<1x4x128xf32> to vector<4x128xf32>
    %cst_13 = arith.constant dense<0.000000e+00> : vector<4x4xf32>
    %19 = tpu.matmul %18, %18, %cst_13 {dimension_numbers = #tpu.dot_dimension_numbers<[1], [1], [0], [0], [0, 0, 1, 0], [], []>} : vector<4x128xf32>, vector<4x128xf32>, vector<4x4xf32> -> vector<4x4xf32>
    %20 = arith.addf %16, %19 : vector<4x4xf32>
    %c0_14 = arith.constant 0 : index
    %c0_15 = arith.constant 0 : index
    %c0_16 = arith.constant 0 : index
    %21 = vector.load %arg3[%c0_14, %c0_15, %c0_16] : memref<1x4x4xf32, #tpu.memory_space<vmem>>, vector<1x4x4xf32>
    %22 = vector.shape_cast %21 : vector<1x4x4xf32> to vector<4x4xf32>
    %23 = vector.shape_cast %20 : vector<4x4xf32> to vector<1x4x4xf32>
    tpu.vector_store %arg3[%c0_14, %c0_15, %c0_16], %23 {strides = array<i32>} : memref<1x4x4xf32, #tpu.memory_space<vmem>>, vector<1x4x4xf32>,
    return
  }
  func.func @transform_0(%arg0: i32, %arg1: i32) -> (i32, i32, i32) {
    %c2_i32 = arith.constant 2 : i32
    %0 = arith.muli %arg0, %c2_i32 : i32
    %1 = arith.addi %0, %arg1 : i32
    %c0_i32 = arith.constant 0 : i32
    %c0_i32_0 = arith.constant 0 : i32
    %c0_i32_1 = arith.constant 0 : i32
    return %c0_i32, %c0_i32_0, %1 : i32, i32, i32
  }
  func.func @transform_1(%arg0: i32, %arg1: i32) -> (i32, i32, i32) {
    %c0_i32 = arith.constant 0 : i32
    %c0_i32_0 = arith.constant 0 : i32
    %c0_i32_1 = arith.constant 0 : i32
    return %arg0, %c0_i32, %c0_i32_0 : i32, i32, i32
  }
  func.func @transform_2(%arg0: i32, %arg1: i32) -> (i32, i32, i32) {
    %c0_i32 = arith.constant 0 : i32
    %c0_i32_0 = arith.constant 0 : i32
    %c0_i32_1 = arith.constant 0 : i32
    return %arg0, %c0_i32, %c0_i32_0 : i32, i32, i32
  }
}

</mosaic_0001>

<llo_original>
// kernel: tpu_custom_call.1
$region0: #{tpu_custom_call.1}
  #allocation0 [shape = 'u32[]', space=smem, size = 0x4, offset = 0x4, fixed_abs, tag = 'smem constant byte address 0x4 - core index']
  #allocation1 [shape = 'u32[144,128]{1,0:T(1,128)}', space=vmem, size = 0x12000, scoped, tag = 'internal scratch']
  %s0 = inlined_call_operand.hbm [shape: f32[2,4,256], index: 0, kind: input, shape index: {}]
  %s1 = inlined_call_operand.hbm [shape: f32[1,4,4], index: 1, kind: output, shape index: {0}]
  %s2 = inlined_call_operand.hbm [shape: f32[1,2,4], index: 2, kind: output, shape index: {1}]
  %3 = xla_tuple %s1, %s2
  %s4 = sld [smem:[#allocation0]]
  $region53: #{tpu_custom_call.1} parent=0
    _
  %s6 = ssub.s32 1, %s4
  %s7 = scalar_select 0, %s6, %s4
  $region1: #{tpu_custom_call.1} parent=0
    #allocation2 [shape = 'u8[8192]{0}', space=vmem, size = 0x2000, scoped, tag = 'input window, operand 0']
    #allocation3 [shape = 's32[2]{0}', space=sflag, size = 0x8, scoped, tag = 'scoped memory for tpu_custom_call.1']
    #allocation4 [shape = 's32[2]{0}', space=sflag, size = 0x8, scoped, tag = 'scoped memory for tpu_custom_call.1']
    #allocation5 [shape = 'u8[2048]{0}', space=vmem, size = 0x800, scoped, tag = 'output window, operand 0, single buffered']
    #allocation6 [shape = 'u8[1024]{0}', space=vmem, size = 0x400, scoped, tag = 'output window, operand 1, single buffered']
    #allocation7 [shape = 's32[1]{0}', space=sflag, size = 0x4, scoped, tag = 'scoped memory for tpu_custom_call.1']
    %8 = vsyncpa [#allocation3], 0
    %s9 = scalar_lea.sflag [#allocation3], 1
    %10 = vsyncpa %s9, 0
    %11 = vsyncpa [#allocation4], 0
    %12 = vsyncpa [#allocation7], 0
    loop: start=0, step=1, limit=4
    $region2: #{tpu_custom_call.1} parent=1 // loop_pre_header
      _
    $region3: #{tpu_custom_call.1} parent=1 // loop_header
      %s14 = sphi 0, %s18
      %p15 = scmp.ge.s32.totalorder %s14, 4
      %s21 = sphi 0, %s33
      %s22 = sphi 0, %s29
      %s23 = sphi 0, %s21
      %s24 = sphi 0, %s22
      %s25 = sphi 0, %s23
      %s26 = sphi 0, %s24
      %s40 = sphi 0, %s42
      %s43 = sphi 0, %s40
      %s44 = sphi 0, %s43
      %s60 = sphi 0, %s44
      %s66 = sphi 0, %s68
      %s69 = sphi 0, %s66
      %s70 = sphi 0, %s69
      %s86 = sphi 0, %s70
      %s92 = sphi 0, %s94
      %s95 = sphi 0, %s92
      %s96 = sphi 0, %s95
      %s112 = sphi 0, %s96
    $region4: #{tpu_custom_call.1} parent=1 // loop_header_branch
      %17 = sbr.rel (%p15) target = $region8
    $region5: #{tpu_custom_call.1} parent=1 // loop_body
      %s19 = ssub.s32 %s14, 1
      %s20 = ssub.s32 %s14, 2
      %s27 = sadd.s32 1, %s22
      %p28 = scmp.ge.s32.totalorder %s27, 2
      %s29 = scalar_select %p28, 0, %s27
      %s30 = sadd.s32 1, %s21
      %s31 = scalar_select %p28, %s30, %s21
      %p32 = scmp.ge.s32.totalorder %s31, 1
      %s33 = scalar_select %p32, 0, %s31
      %s34 = smul.u32 %s21, 2
      %s35 = sadd.s32 %s34, %s22
      %s36 = smul.u32 %s33, 2
      %s37 = sadd.s32 %s36, %s29
      %s38 = ssub.s32 %s35, %s37
      %p39 = scmp.eq.s32.totalorder %s38, 0
      %s41 = sadd.s32 %s40, 1
      %s42 = scalar_select %p39, %s40, %s41
      %p45 = pneg %p39
      %p46 = scmp.eq.s32.totalorder %s14, 1
      %p47 = por %p45, %p46
      %p48 = scmp.ne.s32.totalorder %s40, %s43
      %p49 = scmp.eq.s32.totalorder %s14, 0
      %p50 = por %p48, %p49
      %p51 = scmp.ne.s32.totalorder %s40, %s43
      %p52 = scmp.eq.s32.totalorder %s19, 1
      %p53 = por %p51, %p52
      %p54 = scmp.ne.s32.totalorder %s43, %s44
      %p55 = scmp.eq.s32.totalorder %s19, 0
      %p56 = por %p54, %p55
      %p57 = scmp.ne.s32.totalorder %s43, %s44
      %p58 = scmp.eq.s32.totalorder %s20, 1
      %p59 = por %p57, %p58
      %p61 = scmp.ne.s32.totalorder %s44, %s60
      %p62 = scmp.eq.s32.totalorder %s20, 0
      %p63 = por %p61, %p62
      %s64 = ssub.s32 %s21, %s33
      %p65 = scmp.eq.s32.totalorder %s64, 0
      %s67 = sadd.s32 %s66, 1
      %s68 = scalar_select %p65, %s66, %s67
      %p71 = pneg %p65
      %p72 = scmp.eq.s32.totalorder %s14, 1
      %p73 = por %p71, %p72
      %p74 = scmp.ne.s32.totalorder %s66, %s69
      %p75 = scmp.eq.s32.totalorder %s14, 0
      %p76 = por %p74, %p75
      %p77 = scmp.ne.s32.totalorder %s66, %s69
      %p78 = scmp.eq.s32.totalorder %s19, 1
      %p79 = por %p77, %p78
      %p80 = scmp.ne.s32.totalorder %s69, %s70
      %p81 = scmp.eq.s32.totalorder %s19, 0
      %p82 = por %p80, %p81
      %p83 = scmp.ne.s32.totalorder %s69, %s70
      %p84 = scmp.eq.s32.totalorder %s20, 1
      %p85 = por %p83, %p84
      %p87 = scmp.ne.s32.totalorder %s70, %s86
      %p88 = scmp.eq.s32.totalorder %s20, 0
      %p89 = por %p87, %p88
      %s90 = ssub.s32 %s21, %s33
      %p91 = scmp.eq.s32.totalorder %s90, 0
      %s93 = sadd.s32 %s92, 1
      %s94 = scalar_select %p91, %s92, %s93
      %p97 = pneg %p91
      %p98 = scmp.eq.s32.totalorder %s14, 1
      %p99 = por %p97, %p98
      %p100 = scmp.ne.s32.totalorder %s92, %s95
      %p101 = scmp.eq.s32.totalorder %s14, 0
      %p102 = por %p100, %p101
      %p103 = scmp.ne.s32.totalorder %s92, %s95
      %p104 = scmp.eq.s32.totalorder %s19, 1
      %p105 = por %p103, %p104
      %p106 = scmp.ne.s32.totalorder %s95, %s96
      %p107 = scmp.eq.s32.totalorder %s19, 0
      %p108 = por %p106, %p107
      %p109 = scmp.ne.s32.totalorder %s95, %s96
      %p110 = scmp.eq.s32.totalorder %s20, 1
      %p111 = por %p109, %p110
      %p113 = scmp.ne.s32.totalorder %s96, %s112
      %p114 = scmp.eq.s32.totalorder %s20, 0
      %p115 = por %p113, %p114
      %p116 = scmp.le.s32.totalorder 1, %s14
      %p117 = scmp.lt.s32.totalorder %s14, 3
      %p118 = pnand %p116, %p117
      %p119 = pneg %p118
      // Predicated region
      $region9: #{tpu_custom_call.1} parent=5 // pred_check
        _
      $region10: #{tpu_custom_call.1} parent=5 // pred_check_branch
        %121 = sbr.rel (%p118) target = $region12
      $region11: #{tpu_custom_call.1} parent=5 // pred_region
        %s122 = ssub.s32 %s14, 1
      $region12: #{tpu_custom_call.1} parent=5 // pred_fallthru
        _
      %p123 = scmp.lt.s32.totalorder %s14, 2
      // Predicated region
      $region13: #{tpu_custom_call.1} parent=5 // pred_check
        %p124 = pneg %p123
      $region14: #{tpu_custom_call.1} parent=5 // pred_check_branch
        %126 = sbr.rel (%p124) target = $region16
      $region15: #{tpu_custom_call.1} parent=5 // pred_region
        // Predicated region
        $region17: #{tpu_custom_call.1} parent=15 // pred_check
          %p127 = pneg %p50
        $region18: #{tpu_custom_call.1} parent=15 // pred_check_branch
          %129 = sbr.rel (%p127) target = $region20
        $region19: #{tpu_custom_call.1} parent=15 // pred_region
          %s130 = sand.u32 %s40, 1
          %s131 = scalar_lea.sflag [#allocation3], %s130
          %s132 = sand.u32 %s40, 1
          %s133 = smul.addr %s132, 8
          %s134 = scalar_lea.vmem [#allocation2], %s133
          %s135 = smul.u32 %s21, 2
          %s136 = sadd.s32 %s135, %s22
          %s138 = ssub.s32 128, 128
          %139 = vsyncadd %s131, %s138
          %s140 = smul.addr %s136, 64
          %s141 = scalar_lea.hbm %s0, %s140
          %s142 = sshll.u32 %s134, 4
          %s143 = int_to_ptr.vmem [resolvable:$true] %s142
          %148 = dma.hbm_to_vmem [thread:$0]  %s141, 128, %s143, %s131, 128, 64, 4
        $region20: #{tpu_custom_call.1} parent=15 // pred_fallthru
          _
      $region16: #{tpu_custom_call.1} parent=5 // pred_fallthru
        _
      %p149 = scmp.le.s32.totalorder 1, %s14
      %p150 = scmp.lt.s32.totalorder %s14, 3
      %p151 = pnand %p149, %p150
      %p152 = pneg %p151
      // Predicated region
      $region21: #{tpu_custom_call.1} parent=5 // pred_check
        _
      $region22: #{tpu_custom_call.1} parent=5 // pred_check_branch
        %154 = sbr.rel (%p151) target = $region24
      $region23: #{tpu_custom_call.1} parent=5 // pred_region
        %s155 = ssub.s32 %s14, 1
        %s156 = sand.u32 %s43, 1
        %s157 = scalar_lea.sflag [#allocation3], %s156
        %s158 = sand.u32 %s43, 1
        %s159 = smul.addr %s158, 8
        %s160 = scalar_lea.vmem [#allocation2], %s159
        // Predicated region
        $region25: #{tpu_custom_call.1} parent=23 // pred_check
          %p161 = pneg %p56
        $region26: #{tpu_custom_call.1} parent=23 // pred_check_branch
          %163 = sbr.rel (%p161) target = $region28
        $region27: #{tpu_custom_call.1} parent=23 // pred_region
          %164 = dma.done %s157, 128
        $region28: #{tpu_custom_call.1} parent=23 // pred_fallthru
          _
        %s165 = sand.u32 %s43, 1
        %s166 = scalar_lea.sflag [#allocation3], %s165
        %s167 = sand.u32 %s43, 1
        %s168 = smul.addr %s167, 8
        %s169 = scalar_lea.vmem [#allocation2], %s168
        %p170 = pneg %p56
        %p171 = pneg %p53
        %p172 = pneg %p82
        %p173 = pneg %p79
        %p174 = pneg %p108
        %p175 = pneg %p105
        %s176 = smul.u32 %s23, 2
        %s177 = sadd.s32 %s176, %s24
        %p178 = scmp.eq.s32.totalorder %s24, 0
        // Predicated region
        $region29: #{tpu_custom_call.1} parent=23 // pred_check
          %p179 = pneg %p178
        $region30: #{tpu_custom_call.1} parent=23 // pred_check_branch
          %181 = sbr.rel (%p179) target = $region32
        $region31: #{tpu_custom_call.1} parent=23 // pred_region
          %vm182 = vcmask 27648
          %183 = vst.msk [vmem:[#allocation5] sm:$0xf] %vm182, 0.0
          %vm184 = vcmask 25600
          %185 = vst.msk [vmem:[#allocation6] sm:$0x3] %vm184, 0.0
        $region32: #{tpu_custom_call.1} parent=23 // pred_fallthru
          _
        %v186 = vld [vmem:[%s160] sm:$0xf]
        %v187 = vld [vmem:[%s160 + $0x4] sm:$0xf]
        %v188 = vld [vmem:[#allocation6] sm:$0x3]
        %vm189 = vcmask 1043456
        %v190 = vsel %vm189, %v186, 0.0
        %191 = vadd.xlane.f32.xlu0 %v190
        %v192 = vpop.xlane.xlu0 %191
        %v193 = vsel %vm189, %v187, 0.0
        %194 = vadd.xlane.f32.xlu0 %v193
        %v195 = vpop.xlane.xlu0 %194
        %v198 = vlaneseq
        %v199 = vand.u32 %v198, 127
        %v200 = vlaneseq
        %v201 = vshrl.u32 %v200, 7
        %v202 = vsub.s32 %v199, %v201
        %v203 = vrot.slane %v192, %v202
        %v204 = vlaneseq
        %v205 = vshrl.u32 %v204, 7
        %v206 = vsub.s32 %v199, %v205
        %v207 = vrot.slane %v195, %v206
        %vm208 = vcmask 1041409
        %v209 = vsel %vm208, %v207, %v203
        %v211 = vadd.f32 %v188, %v209
        %vm212 = vcmask 25600
        %213 = vst.msk [vmem:[#allocation6] sm:$0x3] %vm212, %v211
        %v214 = vld [vmem:[#allocation5] sm:$0xf]
        %215 = vmatprep.subr.mxu0 0.0
        %216 = vmatpush1.xpose.msra.mxu0 %v186
        %217 = vmatprep.subr.mxu0 0.0
        %218 = vmatpush1.xpose.msra.mxu0 0.0
        %219 = vmatprep.subr.mxu0 0.0
        %220 = vmatpush1.xpose.msra.mxu0 0.0
        %221 = vmatprep.subr.mxu0 0.0
        %222 = vmatpush1.xpose.msra.mxu0 0.0
        %223 = vmatprep.subr.mxu0 0.0
        %224 = vmatpush1.xpose.msra.mxu0 0.0
        %225 = vmatprep.subr.mxu0 0.0
        %226 = vmatpush1.xpose.msra.mxu0 0.0
        %227 = vmatprep.subr.mxu0 0.0
        %228 = vmatpush1.xpose.msra.mxu0 0.0
        %229 = vmatprep.subr.mxu0 0.0
        %230 = vmatpush1.xpose.msra.mxu0 0.0
        %231 = vmatprep.subr.mxu0 0.0
        %232 = vmatpush1.xpose.msra.mxu0 0.0
        %233 = vmatprep.subr.mxu0 0.0
        %234 = vmatpush1.xpose.msra.mxu0 0.0
        %235 = vmatprep.subr.mxu0 0.0
        %236 = vmatpush1.xpose.msra.mxu0 0.0
        %237 = vmatprep.subr.mxu0 0.0
        %238 = vmatpush1.xpose.msra.mxu0 0.0
        %239 = vmatprep.subr.mxu0 0.0
        %240 = vmatpush1.xpose.msra.mxu0 0.0
        %241 = vmatprep.subr.mxu0 0.0
        %242 = vmatpush1.xpose.msra.mxu0 0.0
        %243 = vmatprep.subr.mxu0 0.0
        %244 = vmatpush1.xpose.msra.mxu0 0.0
        %245 = vmatprep.subr.mxu0 0.0
        %246 = vmatpush1.xpose.msra.mxu0 0.0
        %247 = vmatprep.subr.mxu0 0.0
        %248 = vmatpush1.xpose.msra.mxu0 0.0
        %249 = vmatprep.subr.mxu0 0.0
        %250 = vmatpush1.xpose.msra.mxu0 0.0
        %251 = vmatprep.subr.mxu0 0.0
        %252 = vmatpush1.xpose.msra.mxu0 0.0
        %253 = vmatprep.subr.mxu0 0.0
        %254 = vmatpush1.xpose.msra.mxu0 0.0
        %255 = vmatprep.subr.mxu0 0.0
        %256 = vmatpush1.xpose.msra.mxu0 0.0
        %257 = vmatprep.subr.mxu0 0.0
        %258 = vmatpush1.xpose.msra.mxu0 0.0
        %259 = vmatprep.subr.mxu0 0.0
        %260 = vmatpush1.xpose.msra.mxu0 0.0
        %261 = vmatprep.subr.mxu0 0.0
        %262 = vmatpush1.xpose.msra.mxu0 0.0
        %263 = vmatprep.subr.mxu0 0.0
        %264 = vmatpush1.xpose.msra.mxu0 0.0
        %265 = vmatprep.subr.mxu0 0.0
        %266 = vmatpush1.xpose.msra.mxu0 0.0
        %267 = vmatprep.subr.mxu0 0.0
        %268 = vmatpush1.xpose.msra.mxu0 0.0
        %269 = vmatprep.subr.mxu0 0.0
        %270 = vmatpush1.xpose.msra.mxu0 0.0
        %271 = vmatprep.subr.mxu0 0.0
        %272 = vmatpush1.xpose.msra.mxu0 0.0
        %273 = vmatprep.subr.mxu0 0.0
        %274 = vmatpush1.xpose.msra.mxu0 0.0
        %275 = vmatprep.subr.mxu0 0.0
        %276 = vmatpush1.xpose.msra.mxu0 0.0
        %277 = vmatprep.subr.mxu0 0.0
        %278 = vmatpush1.xpose.msra.mxu0 0.0
        %279 = vmatprep.mubr.f32.mxu0 0.0
        %280 = vmatmul.mubr.f32.gmra.mrb[0].mxu0 %v186
        %v281 = vpop.f32.mrb[0].mxu0
        %v282 = vadd.f32 0.0, %v281
        %v283 = vpop.f32.mrb[0].mxu0
        %284 = vdwg.mxu0
        %v285 = vadd.f32 %v214, %v282
        %286 = vmatprep.subr.mxu0 0.0
        %287 = vmatpush1.xpose.msra.mxu0 %v187
        %288 = vmatprep.subr.mxu0 0.0
        %289 = vmatpush1.xpose.msra.mxu0 0.0
        %290 = vmatprep.subr.mxu0 0.0
        %291 = vmatpush1.xpose.msra.mxu0 0.0
        %292 = vmatprep.subr.mxu0 0.0
        %293 = vmatpush1.xpose.msra.mxu0 0.0
        %294 = vmatprep.subr.mxu0 0.0
        %295 = vmatpush1.xpose.msra.mxu0 0.0
        %296 = vmatprep.subr.mxu0 0.0
        %297 = vmatpush1.xpose.msra.mxu0 0.0
        %298 = vmatprep.subr.mxu0 0.0
        %299 = vmatpush1.xpose.msra.mxu0 0.0
        %300 = vmatprep.subr.mxu0 0.0
        %301 = vmatpush1.xpose.msra.mxu0 0.0
        %302 = vmatprep.subr.mxu0 0.0
        %303 = vmatpush1.xpose.msra.mxu0 0.0
        %304 = vmatprep.subr.mxu0 0.0
        %305 = vmatpush1.xpose.msra.mxu0 0.0
        %306 = vmatprep.subr.mxu0 0.0
        %307 = vmatpush1.xpose.msra.mxu0 0.0
        %308 = vmatprep.subr.mxu0 0.0
        %309 = vmatpush1.xpose.msra.mxu0 0.0
        %310 = vmatprep.subr.mxu0 0.0
        %311 = vmatpush1.xpose.msra.mxu0 0.0
        %312 = vmatprep.subr.mxu0 0.0
        %313 = vmatpush1.xpose.msra.mxu0 0.0
        %314 = vmatprep.subr.mxu0 0.0
        %315 = vmatpush1.xpose.msra.mxu0 0.0
        %316 = vmatprep.subr.mxu0 0.0
        %317 = vmatpush1.xpose.msra.mxu0 0.0
        %318 = vmatprep.subr.mxu0 0.0
        %319 = vmatpush1.xpose.msra.mxu0 0.0
        %320 = vmatprep.subr.mxu0 0.0
        %321 = vmatpush1.xpose.msra.mxu0 0.0
        %322 = vmatprep.subr.mxu0 0.0
        %323 = vmatpush1.xpose.msra.mxu0 0.0
        %324 = vmatprep.subr.mxu0 0.0
        %325 = vmatpush1.xpose.msra.mxu0 0.0
        %326 = vmatprep.subr.mxu0 0.0
        %327 = vmatpush1.xpose.msra.mxu0 0.0
        %328 = vmatprep.subr.mxu0 0.0
        %329 = vmatpush1.xpose.msra.mxu0 0.0
        %330 = vmatprep.subr.mxu0 0.0
        %331 = vmatpush1.xpose.msra.mxu0 0.0
        %332 = vmatprep.subr.mxu0 0.0
        %333 = vmatpush1.xpose.msra.mxu0 0.0
        %334 = vmatprep.subr.mxu0 0.0
        %335 = vmatpush1.xpose.msra.mxu0 0.0
        %336 = vmatprep.subr.mxu0 0.0
        %337 = vmatpush1.xpose.msra.mxu0 0.0
        %338 = vmatprep.subr.mxu0 0.0
        %339 = vmatpush1.xpose.msra.mxu0 0.0
        %340 = vmatprep.subr.mxu0 0.0
        %341 = vmatpush1.xpose.msra.mxu0 0.0
        %342 = vmatprep.subr.mxu0 0.0
        %343 = vmatpush1.xpose.msra.mxu0 0.0
        %344 = vmatprep.subr.mxu0 0.0
        %345 = vmatpush1.xpose.msra.mxu0 0.0
        %346 = vmatprep.subr.mxu0 0.0
        %347 = vmatpush1.xpose.msra.mxu0 0.0
        %348 = vmatprep.subr.mxu0 0.0
        %349 = vmatpush1.xpose.msra.mxu0 0.0
        %350 = vmatprep.mubr.f32.mxu0 0.0
        %351 = vmatmul.mubr.f32.gmra.mrb[0].mxu0 %v187
        %v352 = vpop.f32.mrb[0].mxu0
        %v353 = vadd.f32 0.0, %v352
        %v354 = vpop.f32.mrb[0].mxu0
        %355 = vdwg.mxu0
        %v356 = vadd.f32 %v285, %v353
        %vm357 = vcmask 27648
        %358 = vst.msk [vmem:[#allocation5] sm:$0xf] %vm357, %v356
        // Predicated region
        $region33: #{tpu_custom_call.1} parent=23 // pred_check
          %p359 = pneg %p79
        $region34: #{tpu_custom_call.1} parent=23 // pred_check_branch
          %361 = sbr.rel (%p359) target = $region36
        $region35: #{tpu_custom_call.1} parent=23 // pred_region
          %s363 = ssub.s32 64, 64
          %364 = vsyncadd [#allocation4], %s363
          %s365 = smul.addr %s23, 64
          %s366 = scalar_lea.hbm %s1, %s365
          %s368 = sshll.u32 [#allocation5], 4
          %s369 = int_to_ptr.vmem [resolvable:$true] %s368
          %371 = dma.vmem_to_hbm [thread:$0]  %s369, 64, %s366, [#allocation4]
        $region36: #{tpu_custom_call.1} parent=23 // pred_fallthru
          _
        // Predicated region
        $region37: #{tpu_custom_call.1} parent=23 // pred_check
          %p372 = pneg %p105
        $region38: #{tpu_custom_call.1} parent=23 // pred_check_branch
          %374 = sbr.rel (%p372) target = $region40
        $region39: #{tpu_custom_call.1} parent=23 // pred_region
          %s376 = ssub.s32 32, 32
          %377 = vsyncadd [#allocation7], %s376
          %s378 = smul.addr %s23, 32
          %s379 = scalar_lea.hbm %s2, %s378
          %s381 = sshll.u32 [#allocation6], 4
          %s382 = int_to_ptr.vmem [resolvable:$true] %s381
          %384 = dma.vmem_to_hbm [thread:$0]  %s382, 32, %s379, [#allocation7]
        $region40: #{tpu_custom_call.1} parent=23 // pred_fallthru
          _
        // Predicated region
        $region41: #{tpu_custom_call.1} parent=23 // pred_check
          %p385 = pneg %p79
        $region42: #{tpu_custom_call.1} parent=23 // pred_check_branch
          %387 = sbr.rel (%p385) target = $region44
        $region43: #{tpu_custom_call.1} parent=23 // pred_region
          %388 = dma.done [#allocation4], 64
        $region44: #{tpu_custom_call.1} parent=23 // pred_fallthru
          _
        // Predicated region
        $region45: #{tpu_custom_call.1} parent=23 // pred_check
          %p389 = pneg %p105
        $region46: #{tpu_custom_call.1} parent=23 // pred_check_branch
          %391 = sbr.rel (%p389) target = $region48
        $region47: #{tpu_custom_call.1} parent=23 // pred_region
          %392 = dma.done [#allocation7], 32
        $region48: #{tpu_custom_call.1} parent=23 // pred_fallthru
          _
      $region24: #{tpu_custom_call.1} parent=5 // pred_fallthru
        _
      %p393 = scmp.le.s32.totalorder 2, %s14
      // Predicated region
      $region49: #{tpu_custom_call.1} parent=5 // pred_check
        %p394 = pneg %p393
      $region50: #{tpu_custom_call.1} parent=5 // pred_check_branch
        %396 = sbr.rel (%p394) target = $region52
      $region51: #{tpu_custom_call.1} parent=5 // pred_region
        %s397 = ssub.s32 %s14, 2
      $region52: #{tpu_custom_call.1} parent=5 // pred_fallthru
        _
    $region6: #{tpu_custom_call.1} parent=1 // loop_footer
      %s18 = sadd.s32 1, %s14
    $region7: #{tpu_custom_call.1} parent=1 // loop_footer_branch
      %13 = sbr.rel target = $region3
    $region8: #{tpu_custom_call.1} parent=1 // loop_exit
      _
    %398 = vsyncpa [#allocation3], 1
    %s399 = scalar_lea.sflag [#allocation3], 1
    %400 = vsyncpa %s399, 1
    %401 = vsyncpa [#allocation4], 1
    %s402 = scalar_lea.sflag [#allocation4], 1
    %403 = vsyncpa %s402, 1
    %404 = vsyncpa [#allocation7], 1

</llo_original>
